<compile_context>
chip_gen: v6e
topology: v6e:2x2x1
jax: 0.10.0
libtpu: 0.0.40
codegen_flags: <defaults>
</compile_context>

<pallas_src>
import jax
import jax.numpy as jnp
from jax.experimental import pallas as pl
from jax.experimental.pallas import tpu as pltpu

# ---------------- model dims (small, consistent with the module) ----------------
BATCH = 8
TARGET_SIZE = 16
EMBED_SIZE = 32      # `embed_size` is a module-level global in the original code
HIDDEN_SIZE = 32     # 4*H = 128 -> gate slab fills exactly one lane width


# ---------------------------------- kernel --------------------------------------
def decoder_lstm_kernel(tok_ref, table_ref, whh_ref, hx_ref, cx_ref, hc_ref):
    """One LSTMCell step with the embedding lookup pre-fused into `table`.

    tok_ref   : (B,)   int32, SMEM  — token ids (scalar path)
    table_ref : (T,4H) f32,   VMEM  — embedding @ W_ih^T + (b_ih + b_hh)
    whh_ref   : (H,4H) f32,   VMEM  — W_hh^T
    hx_ref    : (B,H)  f32,   VMEM
    cx_ref    : (B,H)  f32,   VMEM
    hc_ref    : (B,2H) f32,   VMEM  — output, [h_new || c_new]
    """
    B, H = hx_ref.shape
    h = hx_ref[...]
    c = cx_ref[...]

    # Embedding lookup fused with input projection + biases: gather the
    # precomputed gate rows (one dynamic sublane slice per batch element;
    # B is tiny and static).  padding_idx=0 is handled by the zeroed embedding
    # row 0 -> table row 0 is just the bias, exactly as PyTorch computes it.
    rows = [table_ref[pl.ds(tok_ref[b], 1), :] for b in range(B)]   # each (1, 4H)
    x_gates = jnp.concatenate(rows, axis=0)                          # (B, 4H)

    # Dropout(p=0.2): identity (eval-mode semantics).
    # TODO(synk): training-mode dropout would use pltpu.prng_seed + prng_random_bits
    #             with 1/(1-p) scaling.

    # Single remaining MXU pass: recurrent projection.  Gate order i,f,g,o
    # matches torch.nn.LSTMCell.
    gates = x_gates + jnp.dot(h, whh_ref[...], preferred_element_type=jnp.float32)

    i_g = jax.nn.sigmoid(gates[:, 0 * H:1 * H])
    f_g = jax.nn.sigmoid(gates[:, 1 * H:2 * H])
    g_g = jnp.tanh(gates[:, 2 * H:3 * H])
    o_g = jax.nn.sigmoid(gates[:, 3 * H:4 * H])

    c_new = f_g * c + i_g * g_g
    h_new = o_g * jnp.tanh(c_new)

    # Single (B, 2H) store instead of two (B, H) masked stores.
    hc_ref[...] = jnp.concatenate([h_new, c_new], axis=-1).astype(hc_ref.dtype)


# ------------------------------ one-time weight prep ------------------------------
def prep_params(params):
    """Hoisted out of the per-step call: fuse embedding + W_ih + biases into a
    (T, 4H) lookup table and pre-transpose the recurrent weight."""
    table = (params["embedding"] @ params["weight_ih"].T
             + params["bias_ih"] + params["bias_hh"])              # (T, 4H)
    whh_t = params["weight_hh"].T                                  # (H, 4H)
    return {"table": table, "whh_t": whh_t}


# ------------------------------- pallas wrapper ----------------------------------
@jax.jit
def lstm_step(prepped, target_words, hx, cx):
    """Runs the fused embedding-gather + LSTMCell in a single Pallas kernel.
    Returns (w_hx, w_cx) — the LSTMCell outputs."""
    B, H = hx.shape
    vmem = lambda: pl.BlockSpec(memory_space=pltpu.MemorySpace.VMEM)
    smem = pl.BlockSpec(memory_space=pltpu.MemorySpace.SMEM)

    hc = pl.pallas_call(
        decoder_lstm_kernel,
        out_shape=jax.ShapeDtypeStruct((B, 2 * H), jnp.float32),
        in_specs=[smem, vmem(), vmem(), vmem(), vmem()],
        out_specs=vmem(),
    )(target_words.astype(jnp.int32), prepped["table"], prepped["whh_t"], hx, cx)

    return hc[:, :H], hc[:, H:]


def decoder_forward(prepped, target_words, hx, cx):
    """Mirror of Decoder.forward: computes the LSTM step but returns the
    *input* (hx, cx), exactly as the PyTorch module does.
    NOTE: because the kernel outputs are unused here, an enclosing jit would
    dead-code-eliminate the pallas_call — consume lstm_step's outputs downstream
    if the surrounding model actually needs them."""
    _w_hx, _w_cx = lstm_step(prepped, target_words, hx, cx)
    return hx, cx


# ------------------------------ param init ---------------------------------------
def init_params(key):
    k_emb, k_wih, k_whh, k_bih, k_bhh = jax.random.split(key, 5)
    emb = 0.1 * jax.random.normal(k_emb, (TARGET_SIZE, EMBED_SIZE), jnp.float32)
    emb = emb.at[0].set(0.0)  # padding_idx=0
    return {
        "embedding": emb,
        "weight_ih": 0.1 * jax.random.normal(k_wih, (4 * HIDDEN_SIZE, EMBED_SIZE), jnp.float32),
        "weight_hh": 0.1 * jax.random.normal(k_whh, (4 * HIDDEN_SIZE, HIDDEN_SIZE), jnp.float32),
        "bias_ih": 0.1 * jax.random.normal(k_bih, (4 * HIDDEN_SIZE,), jnp.float32),
        "bias_hh": 0.1 * jax.random.normal(k_bhh, (4 * HIDDEN_SIZE,), jnp.float32),
    }


# ------------------------------ pure-JAX reference --------------------------------
def lstm_step_ref(params, target_words, hx, cx):
    x = params["embedding"][target_words]
    gates = (x @ params["weight_ih"].T + hx @ params["weight_hh"].T
             + params["bias_ih"] + params["bias_hh"])
    i, f, g, o = jnp.split(gates, 4, axis=-1)
    c_new = jax.nn.sigmoid(f) * cx + jax.nn.sigmoid(i) * jnp.tanh(g)
    h_new = jax.nn.sigmoid(o) * jnp.tanh(c_new)
    return h_new, c_new


# ----------------------------------- main -----------------------------------------
if __name__ == "__main__":
    key = jax.random.PRNGKey(0)
    k_p, k_w, k_h, k_c = jax.random.split(key, 4)

    params = init_params(k_p)
    prepped = prep_params(params)   # one-time weight fusion (NOT per step)

    target_words = jax.random.randint(k_w, (BATCH,), 0, TARGET_SIZE, dtype=jnp.int32)
    hx = jax.random.normal(k_h, (BATCH, HIDDEN_SIZE), jnp.float32)
    cx = jax.random.normal(k_c, (BATCH, HIDDEN_SIZE), jnp.float32)

    # Run the Pallas kernel (the LSTM hot path) and block on its outputs.
    w_hx, w_cx = lstm_step(prepped, target_words, hx, cx)
    jax.block_until_ready((w_hx, w_cx))

    # Verify against a pure-JAX reference.
    r_hx, r_cx = lstm_step_ref(params, target_words, hx, cx)
    assert jnp.allclose(w_hx, r_hx, atol=1e-5), "h mismatch"
    assert jnp.allclose(w_cx, r_cx, atol=1e-5), "c mismatch"

    # Module-faithful forward: returns the unchanged (hx, cx).
    out_hx, out_cx = decoder_forward(prepped, target_words, hx, cx)
    jax.block_until_ready((out_hx, out_cx))
    assert jnp.array_equal(out_hx, hx) and jnp.array_equal(out_cx, cx)

    print("KERNEL_OK")
</pallas_src>

<mosaic_0001>
module attributes {stable_mosaic.version = 11 : i64} {
  func.func @decoder_lstm_kernel(%arg0: memref<8xi32, #tpu.memory_space<smem>>, %arg1: memref<16x128xf32, #tpu.memory_space<vmem>>, %arg2: memref<32x128xf32, #tpu.memory_space<vmem>>, %arg3: memref<8x32xf32, #tpu.memory_space<vmem>>, %arg4: memref<8x32xf32, #tpu.memory_space<vmem>>, %arg5: memref<8x64xf32, #tpu.memory_space<vmem>>) attributes {dimension_semantics = [], scalar_prefetch = 0 : i64, scratch_operands = 0 : i64, tpu.core_type = #tpu.core_type<tc>} {
    %c0 = arith.constant 0 : index
    %c0_0 = arith.constant 0 : index
    %0 = vector.load %arg3[%c0, %c0_0] : memref<8x32xf32, #tpu.memory_space<vmem>>, vector<8x32xf32>
    %c0_1 = arith.constant 0 : index
    %c0_2 = arith.constant 0 : index
    %1 = vector.load %arg4[%c0_1, %c0_2] : memref<8x32xf32, #tpu.memory_space<vmem>>, vector<8x32xf32>
    %c0_3 = arith.constant 0 : index
    %2 = memref.load %arg0[%c0_3] : memref<8xi32, #tpu.memory_space<smem>>
    %3 = arith.index_cast %2 : i32 to index
    %c0_4 = arith.constant 0 : index
    %4 = vector.load %arg1[%3, %c0_4] : memref<16x128xf32, #tpu.memory_space<vmem>>, vector<1x128xf32>
    %c1 = arith.constant 1 : index
    %5 = memref.load %arg0[%c1] : memref<8xi32, #tpu.memory_space<smem>>
    %6 = arith.index_cast %5 : i32 to index
    %c0_5 = arith.constant 0 : index
    %7 = vector.load %arg1[%6, %c0_5] : memref<16x128xf32, #tpu.memory_space<vmem>>, vector<1x128xf32>
    %c2 = arith.constant 2 : index
    %8 = memref.load %arg0[%c2] : memref<8xi32, #tpu.memory_space<smem>>
    %9 = arith.index_cast %8 : i32 to index
    %c0_6 = arith.constant 0 : index
    %10 = vector.load %arg1[%9, %c0_6] : memref<16x128xf32, #tpu.memory_space<vmem>>, vector<1x128xf32>
    %c3 = arith.constant 3 : index
    %11 = memref.load %arg0[%c3] : memref<8xi32, #tpu.memory_space<smem>>
    %12 = arith.index_cast %11 : i32 to index
    %c0_7 = arith.constant 0 : index
    %13 = vector.load %arg1[%12, %c0_7] : memref<16x128xf32, #tpu.memory_space<vmem>>, vector<1x128xf32>
    %c4 = arith.constant 4 : index
    %14 = memref.load %arg0[%c4] : memref<8xi32, #tpu.memory_space<smem>>
    %15 = arith.index_cast %14 : i32 to index
    %c0_8 = arith.constant 0 : index
    %16 = vector.load %arg1[%15, %c0_8] : memref<16x128xf32, #tpu.memory_space<vmem>>, vector<1x128xf32>
    %c5 = arith.constant 5 : index
    %17 = memref.load %arg0[%c5] : memref<8xi32, #tpu.memory_space<smem>>
    %18 = arith.index_cast %17 : i32 to index
    %c0_9 = arith.constant 0 : index
    %19 = vector.load %arg1[%18, %c0_9] : memref<16x128xf32, #tpu.memory_space<vmem>>, vector<1x128xf32>
    %c6 = arith.constant 6 : index
    %20 = memref.load %arg0[%c6] : memref<8xi32, #tpu.memory_space<smem>>
    %21 = arith.index_cast %20 : i32 to index
    %c0_10 = arith.constant 0 : index
    %22 = vector.load %arg1[%21, %c0_10] : memref<16x128xf32, #tpu.memory_space<vmem>>, vector<1x128xf32>
    %c7 = arith.constant 7 : index
    %23 = memref.load %arg0[%c7] : memref<8xi32, #tpu.memory_space<smem>>
    %24 = arith.index_cast %23 : i32 to index
    %c0_11 = arith.constant 0 : index
    %25 = vector.load %arg1[%24, %c0_11] : memref<16x128xf32, #tpu.memory_space<vmem>>, vector<1x128xf32>
    %26 = tpu.concatenate %4, %7, %10, %13, %16, %19, %22, %25 in 0 : vector<1x128xf32>, vector<1x128xf32>, vector<1x128xf32>, vector<1x128xf32>, vector<1x128xf32>, vector<1x128xf32>, vector<1x128xf32>, vector<1x128xf32> -> vector<8x128xf32>
    %c0_12 = arith.constant 0 : index
    %c0_13 = arith.constant 0 : index
    %27 = vector.load %arg2[%c0_12, %c0_13] : memref<32x128xf32, #tpu.memory_space<vmem>>, vector<32x128xf32>
    %cst = arith.constant dense<0.000000e+00> : vector<8x128xf32>
    %28 = tpu.matmul %0, %27, %cst {dimension_numbers = #tpu.dot_dimension_numbers<[1], [0], [0], [1], [0, 0, 1, 1], [], []>} : vector<8x32xf32>, vector<32x128xf32>, vector<8x128xf32> -> vector<8x128xf32>
    %29 = arith.addf %26, %28 : vector<8x128xf32>
    %30 = vector.extract_strided_slice %29 {offsets = [0, 0], sizes = [8, 32], strides = [1, 1]} : vector<8x128xf32> to vector<8x32xf32>
    %31 = arith.negf %30 : vector<8x32xf32>
    %32 = math.exp %31 : vector<8x32xf32>
    %cst_14 = arith.constant 1.000000e+00 : f32
    %33 = vector.broadcast %cst_14 : f32 to vector<8x32xf32>
    %34 = arith.addf %33, %32 : vector<8x32xf32>
    %35 = arith.divf %33, %34 : vector<8x32xf32>
    %36 = vector.extract_strided_slice %29 {offsets = [0, 32], sizes = [8, 32], strides = [1, 1]} : vector<8x128xf32> to vector<8x32xf32>
    %37 = arith.negf %36 : vector<8x32xf32>
    %38 = math.exp %37 : vector<8x32xf32>
    %cst_15 = arith.constant 1.000000e+00 : f32
    %39 = vector.broadcast %cst_15 : f32 to vector<8x32xf32>
    %40 = arith.addf %39, %38 : vector<8x32xf32>
    %41 = arith.divf %39, %40 : vector<8x32xf32>
    %42 = vector.extract_strided_slice %29 {offsets = [0, 64], sizes = [8, 32], strides = [1, 1]} : vector<8x128xf32> to vector<8x32xf32>
    %43 = math.tanh %42 : vector<8x32xf32>
    %44 = vector.extract_strided_slice %29 {offsets = [0, 96], sizes = [8, 32], strides = [1, 1]} : vector<8x128xf32> to vector<8x32xf32>
    %45 = arith.negf %44 : vector<8x32xf32>
    %46 = math.exp %45 : vector<8x32xf32>
    %cst_16 = arith.constant 1.000000e+00 : f32
    %47 = vector.broadcast %cst_16 : f32 to vector<8x32xf32>
    %48 = arith.addf %47, %46 : vector<8x32xf32>
    %49 = arith.divf %47, %48 : vector<8x32xf32>
    %50 = arith.mulf %41, %1 : vector<8x32xf32>
    %51 = arith.mulf %35, %43 : vector<8x32xf32>
    %52 = arith.addf %50, %51 : vector<8x32xf32>
    %53 = math.tanh %52 : vector<8x32xf32>
    %54 = arith.mulf %49, %53 : vector<8x32xf32>
    %55 = tpu.concatenate %54, %52 in 1 : vector<8x32xf32>, vector<8x32xf32> -> vector<8x64xf32>
    %c0_17 = arith.constant 0 : index
    %c0_18 = arith.constant 0 : index
    %56 = vector.load %arg5[%c0_17, %c0_18] : memref<8x64xf32, #tpu.memory_space<vmem>>, vector<8x64xf32>
    tpu.vector_store %arg5[%c0_17, %c0_18], %55 {strides = array<i32>} : memref<8x64xf32, #tpu.memory_space<vmem>>, vector<8x64xf32>,
    return
  }
}

</mosaic_0001>

<llo_original>
// kernel: lstm_step.1
$region0: #{lstm_step.1}
  #allocation0 [shape = 'u32[]', space=smem, size = 0x4, offset = 0x4, fixed_abs, tag = 'smem constant byte address 0x4 - core index']
  #allocation1 [shape = 'u32[144,128]{1,0:T(1,128)}', space=vmem, size = 0x12000, scoped, tag = 'internal scratch']
  %s0 = inlined_call_operand.vmem [shape: s32[8], index: 0, kind: input, shape index: {}]
  %s1 = inlined_call_operand.hbm [shape: f32[16,128], index: 1, kind: input, shape index: {}]
  %s2 = inlined_call_operand.hbm [shape: f32[32,128], index: 2, kind: input, shape index: {}]
  %s3 = inlined_call_operand.hbm [shape: f32[8,32], index: 3, kind: input, shape index: {}]
  %s4 = inlined_call_operand.hbm [shape: f32[8,32], index: 4, kind: input, shape index: {}]
  %s5 = inlined_call_operand.vmem [shape: f32[8,64], index: 5, kind: output, shape index: {}]
  %s6 = sld [smem:[#allocation0]]
  $region50: #{lstm_step.1} parent=0
    _
  %s8 = ssub.s32 1, %s6
  %s9 = scalar_select 0, %s8, %s6
  $region1: #{lstm_step.1} parent=0
    #allocation2 [shape = 'u8[512]{0}', space=smem, size = 0x200, scoped, tag = 'input window, operand 0, single buffered']
    #allocation3 [shape = 's32[1]{0}', space=sflag, size = 0x4, scoped, tag = 'scoped memory for lstm_step.1']
    #allocation4 [shape = 's32[1]{0}', space=sflag, size = 0x4, scoped, tag = 'scoped memory for lstm_step.1']
    #allocation5 [shape = 'u8[8192]{0}', space=vmem, size = 0x2000, scoped, tag = 'input window, operand 1, single buffered']
    #allocation6 [shape = 'u8[16384]{0}', space=vmem, size = 0x4000, scoped, tag = 'input window, operand 2, single buffered']
    #allocation7 [shape = 's32[1]{0}', space=sflag, size = 0x4, scoped, tag = 'scoped memory for lstm_step.1']
    #allocation8 [shape = 'u8[4096]{0}', space=vmem, size = 0x1000, scoped, tag = 'input window, operand 3, single buffered']
    #allocation9 [shape = 'u8[4096]{0}', space=vmem, size = 0x1000, scoped, tag = 'input window, operand 4, single buffered']
    #allocation10 [shape = 's32[1]{0}', space=sflag, size = 0x4, scoped, tag = 'scoped memory for lstm_step.1']
    %10 = vsyncpa [#allocation4], 0
    %11 = vsyncpa [#allocation3], 0
    %12 = vsyncpa [#allocation7], 0
    %13 = vsyncpa [#allocation10], 0
    // Predicated region
    $region2: #{lstm_step.1} parent=1 // pred_check
      _
    $region3: #{lstm_step.1} parent=1 // pred_check_branch
      %15 = sbr.rel (0) target = $region5
    $region4: #{lstm_step.1} parent=1 // pred_region
      %s17 = ssub.s32 16, 16
      %18 = vsyncadd [#allocation4], %s17
      %s20 = sshll.u32 %s0, 4
      %s21 = int_to_ptr.vmem [resolvable:$true] %s20
      %23 = dma.vmem_to_smem %s21, 16, [#allocation2], [#allocation4]
    $region5: #{lstm_step.1} parent=1 // pred_fallthru
      _
    // Predicated region
    $region6: #{lstm_step.1} parent=1 // pred_check
      _
    $region7: #{lstm_step.1} parent=1 // pred_check_branch
      %25 = sbr.rel (0) target = $region9
    $region8: #{lstm_step.1} parent=1 // pred_region
      %s27 = ssub.s32 256, 256
      %28 = vsyncadd [#allocation3], %s27
      %s29 = sshll.u32 [#allocation5], 4
      %s30 = int_to_ptr.vmem [resolvable:$true] %s29
      %35 = dma.hbm_to_vmem [thread:$0]  %s1, 256, %s30, [#allocation3], 128, 128, 8
    $region9: #{lstm_step.1} parent=1 // pred_fallthru
      _
    // Predicated region
    $region10: #{lstm_step.1} parent=1 // pred_check
      _
    $region11: #{lstm_step.1} parent=1 // pred_check_branch
      %37 = sbr.rel (0) target = $region13
    $region12: #{lstm_step.1} parent=1 // pred_region
      %s39 = ssub.s32 512, 512
      %40 = vsyncadd [#allocation7], %s39
      %s41 = sshll.u32 [#allocation6], 4
      %s42 = int_to_ptr.vmem [resolvable:$true] %s41
      %47 = dma.hbm_to_vmem [thread:$0]  %s2, 512, %s42, [#allocation7], 128, 128, 8
    $region13: #{lstm_step.1} parent=1 // pred_fallthru
      _
    // Predicated region
    $region14: #{lstm_step.1} parent=1 // pred_check
      _
    $region15: #{lstm_step.1} parent=1 // pred_check_branch
      %49 = sbr.rel (0) target = $region17
    $region16: #{lstm_step.1} parent=1 // pred_region
      %s51 = ssub.s32 128, 128
      %52 = vsyncadd [#allocation7], %s51
      %s54 = sshll.u32 [#allocation8], 4
      %s55 = int_to_ptr.vmem [resolvable:$true] %s54
      %57 = dma.hbm_to_vmem [thread:$0]  %s3, 128, %s55, [#allocation7]
    $region17: #{lstm_step.1} parent=1 // pred_fallthru
      _
    // Predicated region
    $region18: #{lstm_step.1} parent=1 // pred_check
      _
    $region19: #{lstm_step.1} parent=1 // pred_check_branch
      %59 = sbr.rel (0) target = $region21
    $region20: #{lstm_step.1} parent=1 // pred_region
      %s61 = ssub.s32 128, 128
      %62 = vsyncadd [#allocation10], %s61
      %s64 = sshll.u32 [#allocation9], 4
      %s65 = int_to_ptr.vmem [resolvable:$true] %s64
      %67 = dma.hbm_to_vmem [thread:$0]  %s4, 128, %s65, [#allocation10]
    $region21: #{lstm_step.1} parent=1 // pred_fallthru
      _
    // Predicated region
    $region22: #{lstm_step.1} parent=1 // pred_check
      _
    $region23: #{lstm_step.1} parent=1 // pred_check_branch
      %69 = sbr.rel (0) target = $region25
    $region24: #{lstm_step.1} parent=1 // pred_region
      %70 = dma.done [#allocation4], 16
    $region25: #{lstm_step.1} parent=1 // pred_fallthru
      _
    // Predicated region
    $region26: #{lstm_step.1} parent=1 // pred_check
      _
    $region27: #{lstm_step.1} parent=1 // pred_check_branch
      %72 = sbr.rel (0) target = $region29
    $region28: #{lstm_step.1} parent=1 // pred_region
      %73 = dma.done [#allocation3], 256
    $region29: #{lstm_step.1} parent=1 // pred_fallthru
      _
    // Predicated region
    $region30: #{lstm_step.1} parent=1 // pred_check
      _
    $region31: #{lstm_step.1} parent=1 // pred_check_branch
      %75 = sbr.rel (0) target = $region33
    $region32: #{lstm_step.1} parent=1 // pred_region
      %76 = dma.done [#allocation7], 512
    $region33: #{lstm_step.1} parent=1 // pred_fallthru
      _
    // Predicated region
    $region34: #{lstm_step.1} parent=1 // pred_check
      _
    $region35: #{lstm_step.1} parent=1 // pred_check_branch
      %78 = sbr.rel (0) target = $region37
    $region36: #{lstm_step.1} parent=1 // pred_region
      %79 = dma.done [#allocation7], 128
    $region37: #{lstm_step.1} parent=1 // pred_fallthru
      _
    // Predicated region
    $region38: #{lstm_step.1} parent=1 // pred_check
      _
    $region39: #{lstm_step.1} parent=1 // pred_check_branch
      %81 = sbr.rel (0) target = $region41
    $region40: #{lstm_step.1} parent=1 // pred_region
      %82 = dma.done [#allocation10], 128
    $region41: #{lstm_step.1} parent=1 // pred_fallthru
      _
    %83 = sfence
    %v84 = vld [vmem:[#allocation8] sm:$0xff]
    %v85 = vld [vmem:[#allocation9] sm:$0xff]
    %s86 = sld [smem:[#allocation2]]
    %s87 = scalar_lea.vmem [#allocation5], %s86
    %v88 = vld [vmem:[%s87] sm:$0x1]
    %s89 = sld [smem:[#allocation2 + $0x1]]
    %s90 = scalar_lea.vmem [#allocation5], %s89
    %v91 = vld [vmem:[%s90] sm:$0x1]
    %s92 = sld [smem:[#allocation2 + $0x2]]
    %s93 = scalar_lea.vmem [#allocation5], %s92
    %v94 = vld [vmem:[%s93] sm:$0x1]
    %s95 = sld [smem:[#allocation2 + $0x3]]
    %s96 = scalar_lea.vmem [#allocation5], %s95
    %v97 = vld [vmem:[%s96] sm:$0x1]
    %s98 = sld [smem:[#allocation2 + $0x4]]
    %s99 = scalar_lea.vmem [#allocation5], %s98
    %v100 = vld [vmem:[%s99] sm:$0x1]
    %s101 = sld [smem:[#allocation2 + $0x5]]
    %s102 = scalar_lea.vmem [#allocation5], %s101
    %v103 = vld [vmem:[%s102] sm:$0x1]
    %s104 = sld [smem:[#allocation2 + $0x6]]
    %s105 = scalar_lea.vmem [#allocation5], %s104
    %v106 = vld [vmem:[%s105] sm:$0x1]
    %s107 = sld [smem:[#allocation2 + $0x7]]
    %s108 = scalar_lea.vmem [#allocation5], %s107
    %v109 = vld [vmem:[%s108] sm:$0x1]
    %v111 = vrot.slane %v91, 7
    %v114 = vrot.slane %v94, 6
    %v117 = vrot.slane %v97, 5
    %v120 = vrot.slane %v100, 4
    %v123 = vrot.slane %v103, 3
    %v126 = vrot.slane %v106, 2
    %v129 = vrot.slane %v109, 1
    %vm131 = vcmask 1040384
    %v132 = vsel %vm131, %v88, %v111
    %vm133 = vcmask 1041408
    %v134 = vsel %vm133, %v132, %v114
    %vm135 = vcmask 1042432
    %v136 = vsel %vm135, %v134, %v117
    %vm137 = vcmask 1043456
    %v138 = vsel %vm137, %v136, %v120
    %vm139 = vcmask 1044480
    %v140 = vsel %vm139, %v138, %v123
    %vm141 = vcmask 1045504
    %v142 = vsel %vm141, %v140, %v126
    %vm143 = vcmask 1046528
    %v144 = vsel %vm143, %v142, %v129
    %v145 = vld [vmem:[#allocation6] sm:$0xff]
    %v146 = vld [vmem:[#allocation6 + $0x8] sm:$0xff]
    %v147 = vld [vmem:[#allocation6 + $0x10] sm:$0xff]
    %v148 = vld [vmem:[#allocation6 + $0x18] sm:$0xff]
    %vm149 = vcmask 261120
    %v151 = vsel %vm149, %v84, 0
    %153 = vmatprep.subr.mxu0 0.0
    %154 = vmatpush1.msra.mxu0 0.0
    %155 = vmatprep.subr.mxu0 0.0
    %156 = vmatpush1.msra.mxu0 0.0
    %157 = vmatprep.subr.mxu0 0.0
    %158 = vmatpush1.msra.mxu0 0.0
    %159 = vmatprep.subr.mxu0 0.0
    %160 = vmatpush1.msra.mxu0 0.0
    %161 = vmatprep.subr.mxu0 0.0
    %162 = vmatpush1.msra.mxu0 0.0
    %163 = vmatprep.subr.mxu0 0.0
    %164 = vmatpush1.msra.mxu0 0.0
    %165 = vmatprep.subr.mxu0 0.0
    %166 = vmatpush1.msra.mxu0 0.0
    %167 = vmatprep.subr.mxu0 0.0
    %168 = vmatpush1.msra.mxu0 0.0
    %169 = vmatprep.subr.mxu0 0.0
    %170 = vmatpush1.msra.mxu0 0.0
    %171 = vmatprep.subr.mxu0 0.0
    %172 = vmatpush1.msra.mxu0 0.0
    %173 = vmatprep.subr.mxu0 0.0
    %174 = vmatpush1.msra.mxu0 0.0
    %175 = vmatprep.subr.mxu0 0.0
    %176 = vmatpush1.msra.mxu0 0.0
    %177 = vmatprep.subr.mxu0 0.0
    %178 = vmatpush1.msra.mxu0 %v148
    %179 = vmatprep.subr.mxu0 0.0
    %180 = vmatpush1.msra.mxu0 %v147
    %181 = vmatprep.subr.mxu0 0.0
    %182 = vmatpush1.msra.mxu0 %v146
    %183 = vmatprep.subr.mxu0 0.0
    %184 = vmatpush1.msra.mxu0 %v145
    %185 = vmatprep.subr.mxu0 0.0
    %186 = vmatpush2.msra.mxu0 0.0
    %187 = vmatprep.subr.mxu0 0.0
    %188 = vmatpush2.msra.mxu0 0.0
    %189 = vmatprep.subr.mxu0 0.0
    %190 = vmatpush2.msra.mxu0 0.0
    %191 = vmatprep.subr.mxu0 0.0
    %192 = vmatpush2.msra.mxu0 0.0
    %193 = vmatprep.subr.mxu0 0.0
    %194 = vmatpush2.msra.mxu0 0.0
    %195 = vmatprep.subr.mxu0 0.0
    %196 = vmatpush2.msra.mxu0 0.0
    %197 = vmatprep.subr.mxu0 0.0
    %198 = vmatpush2.msra.mxu0 0.0
    %199 = vmatprep.subr.mxu0 0.0
    %200 = vmatpush2.msra.mxu0 0.0
    %201 = vmatprep.subr.mxu0 0.0
    %202 = vmatpush2.msra.mxu0 0.0
    %203 = vmatprep.subr.mxu0 0.0
    %204 = vmatpush2.msra.mxu0 0.0
    %205 = vmatprep.subr.mxu0 0.0
    %206 = vmatpush2.msra.mxu0 0.0
    %207 = vmatprep.subr.mxu0 0.0
    %208 = vmatpush2.msra.mxu0 0.0
    %209 = vmatprep.subr.mxu0 0.0
    %210 = vmatpush2.msra.mxu0 0.0
    %211 = vmatprep.subr.mxu0 0.0
    %212 = vmatpush2.msra.mxu0 0.0
    %213 = vmatprep.subr.mxu0 0.0
    %214 = vmatpush2.msra.mxu0 0.0
    %215 = vmatprep.subr.mxu0 0.0
    %216 = vmatpush2.msra.mxu0 0.0
    %217 = vmatprep.mubr.f32.mxu0 0.0
    %218 = vmatmul.mubr.f32.gmra.mxu0 %v151
    %v219 = vpop.f32.mrf.mxu0
    %v220 = vadd.f32 0.0, %v219
    %v221 = vpop.f32.mrf.mxu0
    %222 = vdwg.mxu0
    %v223 = vadd.f32 %v144, %v220
    %v224 = vxor.u32 %v223, 2147483648
    %v225 = vmul.f32 %v224, 1.442695
    %v226 = vpow.pop %v225
    %v227 = vadd.f32 %v226, 1.0
    %v228 = vrcp.pop %v227
    %v229 = vmul.f32 1.0, %v228
    %v230 = vtanh.pop %v223
    %232 = vrot.lane.b32.xlu0 %v85, 32
    %v233 = vpop.permute.xlu0 %232
    %v235 = vmul.f32 %v229, %v233
    %237 = vrot.lane.b32.xlu0 %v230, 64
    %v238 = vpop.permute.xlu0 %237
    %v240 = vmul.f32 %v229, %v238
    %242 = vrot.lane.b32.xlu0 %v240, 32
    %v243 = vpop.permute.xlu0 %242
    %v245 = vadd.f32 %v235, %v243
    %v246 = vtanh.pop %v245
    %248 = vrot.lane.b32.xlu0 %v246, 64
    %v249 = vpop.permute.xlu0 %248
    %v251 = vmul.f32 %v229, %v249
    %253 = vrot.lane.b32.xlu0 %v251, 32
    %v254 = vpop.permute.xlu0 %253
    %v256 = vsel %vm149, %v254, %v245
    %vm257 = vcmask 523264
    %258 = vst.msk [vmem:[%s5] sm:$0xff] %vm257, %v256
    // Predicated region
    $region42: #{lstm_step.1} parent=1 // pred_check
      _
    $region43: #{lstm_step.1} parent=1 // pred_check_branch
      %260 = sbr.rel (0) target = $region45
    $region44: #{lstm_step.1} parent=1 // pred_region
      _
    $region45: #{lstm_step.1} parent=1 // pred_fallthru
      _
    // Predicated region
    $region46: #{lstm_step.1} parent=1 // pred_check
      _
    $region47: #{lstm_step.1} parent=1 // pred_check_branch
      %262 = sbr.rel (0) target = $region49
    $region48: #{lstm_step.1} parent=1 // pred_region
      _
    $region49: #{lstm_step.1} parent=1 // pred_fallthru
      _
    %263 = vsyncpa [#allocation3], 1
    %264 = vsyncpa [#allocation7], 1
    %265 = vsyncpa [#allocation10], 1
    %266 = vsyncpa [#allocation4], 1

</llo_original>
